<compile_context>
chip_gen: v7x
topology: tpu7x:2x2x1
jax: 0.10.0
libtpu: 0.0.40
codegen_flags: <defaults>
</compile_context>

<pallas_src>
import jax
import jax.numpy as jnp
from jax.experimental import pallas as pl
from jax.experimental.pallas import tpu as pltpu

LANE = 128


def _round_up(x, m):
    return ((x + m - 1) // m) * m


def _cdiv(a, b):
    return (a + b - 1) // b


def _mlp_kernel(x_ref,
                w1_ref, b1_ref,
                w2_ref, b2_ref,
                w3_ref, b3_ref,
                w4_ref, b4_ref,
                o_ref):
    # cast the raw f32 input tile to bf16 in-kernel (no wrapper pad/cast pass)
    x = x_ref[...].astype(jnp.bfloat16)
    # fc1 + ReLU   (dropout1 == identity in eval)
    h = jnp.dot(x, w1_ref[...], preferred_element_type=jnp.float32)
    h = jnp.maximum(h + b1_ref[...], 0.0).astype(jnp.bfloat16)
    # fc2 + ReLU   (dropout2 == identity in eval)
    h = jnp.dot(h, w2_ref[...], preferred_element_type=jnp.float32)
    h = jnp.maximum(h + b2_ref[...], 0.0).astype(jnp.bfloat16)
    # fc3 + ReLU   (dropout3 == identity in eval; padded cols stay exactly 0)
    h = jnp.dot(h, w3_ref[...], preferred_element_type=jnp.float32)
    h = jnp.maximum(h + b3_ref[...], 0.0).astype(jnp.bfloat16)
    # fc4 (logits, no activation; padded output cols are 0)
    h = jnp.dot(h, w4_ref[...], preferred_element_type=jnp.float32)
    o_ref[...] = (h + b4_ref[...]).astype(o_ref.dtype)   # bf16 writeback


def music_classifier_forward(x, params, *, batch_tile=2048):
    """x: (B, input_size) float32; params: dict of w1..w4 (in,out), b1..b4 (1,out)."""
    B, F = x.shape
    num_classes = params["w4"].shape[1]

    # ---- lane-dense padded *small* dims (hidden-64 and classes -> 128) ------
    H3p = LANE
    Cp = LANE

    # ---- batch tiling --------------------------------------------------------
    if B <= 256:
        # tiny-batch path: one tile, rounded to 16 rows (bf16 sublane packing);
        # the (at most 15-row) pad copy here is negligible.
        TB = _round_up(B, 16)
        Bp = TB
        if Bp != B:
            x = jnp.pad(x, ((0, Bp - B), (0, 0)))
    else:
        # large-batch path: big tiles (overhead amortization), but cap so the
        # grid has >=2 steps (v7x dual-TC sharding of the "parallel" axis).
        TB = max(256, min(batch_tile, _round_up(_cdiv(B, 2), 256)))
        Bp = B   # ragged last block handled by Pallas OOB semantics

    grid = (_cdiv(Bp, TB),)

    # ---- weights / biases (tiny; cast once, zero-pad the narrow dims) -------
    w1 = params["w1"].astype(jnp.bfloat16)                                   # (F, 256)
    b1 = params["b1"].astype(jnp.float32)                                    # (1, 256)
    w2 = params["w2"].astype(jnp.bfloat16)                                   # (256, 128)
    b2 = params["b2"].astype(jnp.float32)                                    # (1, 128)
    w3 = jnp.zeros((128, H3p), jnp.float32).at[:, :64].set(params["w3"]).astype(jnp.bfloat16)
    b3 = jnp.zeros((1, H3p), jnp.float32).at[:, :64].set(params["b3"])
    w4 = jnp.zeros((H3p, Cp), jnp.float32).at[:64, :num_classes].set(params["w4"]).astype(jnp.bfloat16)
    b4 = jnp.zeros((1, Cp), jnp.float32).at[:, :num_classes].set(params["b4"])

    def resident(shape):
        # constant index_map -> weights/biases DMA'd once and kept in VMEM
        return pl.BlockSpec(shape, lambda b: (0, 0))

    in_specs = [
        # x tile walks the batch; full-F last-dim block (F need not be /128)
        pl.BlockSpec((TB, F), lambda b: (b, 0)),
        resident(w1.shape), resident(b1.shape),
        resident(w2.shape), resident(b2.shape),
        resident(w3.shape), resident(b3.shape),
        resident(w4.shape), resident(b4.shape),
    ]
    out_specs = pl.BlockSpec((TB, Cp), lambda b: (b, 0))

    flops = 2 * B * (F * 256 + 256 * 128 + 128 * 64 + 64 * num_classes)
    bytes_accessed = (
        Bp * F * 4 + Bp * Cp * 2
        + sum(int(a.size) * a.dtype.itemsize
              for a in (w1, b1, w2, b2, w3, b3, w4, b4))
    )

    out_padded = pl.pallas_call(
        _mlp_kernel,
        out_shape=jax.ShapeDtypeStruct((Bp, Cp), jnp.bfloat16),
        grid=grid,
        in_specs=in_specs,
        out_specs=out_specs,
        compiler_params=pltpu.CompilerParams(
            dimension_semantics=("parallel",)),
        cost_estimate=pl.CostEstimate(
            flops=flops, transcendentals=0, bytes_accessed=bytes_accessed),
    )(x, w1, b1, w2, b2, w3, b3, w4, b4)

    # strip any batch padding / garbage tail rows and the zero-padded logit
    # columns (zero-padded columns are NOT safe under softmax/argmax, so they
    # must be removed here). Cast back to f32 for the caller.
    return out_padded[:B, :num_classes].astype(jnp.float32)


def init_params(key, input_size, num_classes):
    """Deterministic synthetic init (shapes match MusicClassifier.__init__)."""
    dims = [input_size, 256, 128, 64, num_classes]
    params = {}
    for i in range(4):
        key, kw, kb = jax.random.split(key, 3)
        fan_in, fan_out = dims[i], dims[i + 1]
        bound = 1.0 / jnp.sqrt(fan_in)
        # stored (in, out); biases kept 2-D (1, out) for TPU-friendly layout
        params[f"w{i+1}"] = jax.random.uniform(
            kw, (fan_in, fan_out), jnp.float32, -bound, bound)
        params[f"b{i+1}"] = jax.random.uniform(
            kb, (1, fan_out), jnp.float32, -bound, bound)
    return params


def reference_forward(x, params):
    h = x
    for i in range(1, 4):
        h = jnp.maximum(h @ params[f"w{i}"] + params[f"b{i}"], 0.0)
    return h @ params["w4"] + params["b4"]


if __name__ == "__main__":
    # pca.n_components_ is unknown at kernel-authoring time -> pick small size
    INPUT_SIZE = 32
    NUM_CLASSES = 10
    BATCH = 8

    key = jax.random.PRNGKey(0)
    key, kx = jax.random.split(key)
    x = jax.random.normal(kx, (BATCH, INPUT_SIZE), jnp.float32)
    params = init_params(key, INPUT_SIZE, NUM_CLASSES)

    fwd = jax.jit(music_classifier_forward)
    out = jax.block_until_ready(fwd(x, params))

    ref = reference_forward(x, params)                       # f32 reference
    assert out.shape == (BATCH, NUM_CLASSES)
    # bf16 matmul operands / bf16 logits with f32 accumulation -> few % tol
    assert jnp.allclose(out, ref, atol=5e-2, rtol=5e-2), "mismatch vs reference"

    print("KERNEL_OK")
</pallas_src>

<mosaic_0001>
module attributes {stable_mosaic.version = 11 : i64} {
  func.func @_mlp_kernel(%arg0: i32, %arg1: memref<16x32xf32, #tpu.memory_space<vmem>>, %arg2: memref<32x256xbf16, #tpu.memory_space<vmem>>, %arg3: memref<1x256xf32, #tpu.memory_space<vmem>>, %arg4: memref<256x128xbf16, #tpu.memory_space<vmem>>, %arg5: memref<1x128xf32, #tpu.memory_space<vmem>>, %arg6: memref<128x128xbf16, #tpu.memory_space<vmem>>, %arg7: memref<1x128xf32, #tpu.memory_space<vmem>>, %arg8: memref<128x128xbf16, #tpu.memory_space<vmem>>, %arg9: memref<1x128xf32, #tpu.memory_space<vmem>>, %arg10: memref<16x128xbf16, #tpu.memory_space<vmem>>) attributes {dimension_semantics = [#tpu.dimension_semantics<parallel>], iteration_bounds = array<i64: 1>, scalar_prefetch = 0 : i64, scratch_operands = 0 : i64, tpu.core_type = #tpu.core_type<tc>, window_params = [{transform_indices = @transform_0, window_bounds = array<i64: 16, 32>}, {pipeline_mode = #tpu.pipeline_mode<synchronous>, transform_indices = @transform_1, window_bounds = array<i64: 32, 256>}, {pipeline_mode = #tpu.pipeline_mode<synchronous>, transform_indices = @transform_2, window_bounds = array<i64: 1, 256>}, {pipeline_mode = #tpu.pipeline_mode<synchronous>, transform_indices = @transform_3, window_bounds = array<i64: 256, 128>}, {pipeline_mode = #tpu.pipeline_mode<synchronous>, transform_indices = @transform_4, window_bounds = array<i64: 1, 128>}, {pipeline_mode = #tpu.pipeline_mode<synchronous>, transform_indices = @transform_5, window_bounds = array<i64: 128, 128>}, {pipeline_mode = #tpu.pipeline_mode<synchronous>, transform_indices = @transform_6, window_bounds = array<i64: 1, 128>}, {pipeline_mode = #tpu.pipeline_mode<synchronous>, transform_indices = @transform_7, window_bounds = array<i64: 128, 128>}, {pipeline_mode = #tpu.pipeline_mode<synchronous>, transform_indices = @transform_8, window_bounds = array<i64: 1, 128>}, {transform_indices = @transform_9, window_bounds = array<i64: 16, 128>}]} {
    %c0 = arith.constant 0 : index
    %c0_0 = arith.constant 0 : index
    %0 = vector.load %arg1[%c0, %c0_0] : memref<16x32xf32, #tpu.memory_space<vmem>>, vector<16x32xf32>
    %1 = arith.truncf %0 : vector<16x32xf32> to vector<16x32xbf16>
    %c0_1 = arith.constant 0 : index
    %c0_2 = arith.constant 0 : index
    %2 = vector.load %arg2[%c0_1, %c0_2] : memref<32x256xbf16, #tpu.memory_space<vmem>>, vector<32x256xbf16>
    %cst = arith.constant dense<0.000000e+00> : vector<16x256xf32>
    %3 = tpu.matmul %1, %2, %cst {dimension_numbers = #tpu.dot_dimension_numbers<[1], [0], [0], [1], [0, 0, 1, 1], [], []>} : vector<16x32xbf16>, vector<32x256xbf16>, vector<16x256xf32> -> vector<16x256xf32>
    %c0_3 = arith.constant 0 : index
    %c0_4 = arith.constant 0 : index
    %4 = vector.load %arg3[%c0_3, %c0_4] : memref<1x256xf32, #tpu.memory_space<vmem>>, vector<1x256xf32>
    %5 = vector.broadcast %4 : vector<1x256xf32> to vector<16x256xf32>
    %6 = arith.addf %3, %5 : vector<16x256xf32>
    %cst_5 = arith.constant 0.000000e+00 : f32
    %7 = vector.broadcast %cst_5 : f32 to vector<16x256xf32>
    %8 = arith.maximumf %6, %7 : vector<16x256xf32>
    %9 = arith.truncf %8 : vector<16x256xf32> to vector<16x256xbf16>
    %c0_6 = arith.constant 0 : index
    %c0_7 = arith.constant 0 : index
    %10 = vector.load %arg4[%c0_6, %c0_7] : memref<256x128xbf16, #tpu.memory_space<vmem>>, vector<256x128xbf16>
    %cst_8 = arith.constant dense<0.000000e+00> : vector<16x128xf32>
    %11 = tpu.matmul %9, %10, %cst_8 {dimension_numbers = #tpu.dot_dimension_numbers<[1], [0], [0], [1], [0, 0, 1, 1], [], []>} : vector<16x256xbf16>, vector<256x128xbf16>, vector<16x128xf32> -> vector<16x128xf32>
    %c0_9 = arith.constant 0 : index
    %c0_10 = arith.constant 0 : index
    %12 = vector.load %arg5[%c0_9, %c0_10] : memref<1x128xf32, #tpu.memory_space<vmem>>, vector<1x128xf32>
    %13 = vector.broadcast %12 : vector<1x128xf32> to vector<16x128xf32>
    %14 = arith.addf %11, %13 : vector<16x128xf32>
    %cst_11 = arith.constant 0.000000e+00 : f32
    %15 = vector.broadcast %cst_11 : f32 to vector<16x128xf32>
    %16 = arith.maximumf %14, %15 : vector<16x128xf32>
    %17 = arith.truncf %16 : vector<16x128xf32> to vector<16x128xbf16>
    %c0_12 = arith.constant 0 : index
    %c0_13 = arith.constant 0 : index
    %18 = vector.load %arg6[%c0_12, %c0_13] : memref<128x128xbf16, #tpu.memory_space<vmem>>, vector<128x128xbf16>
    %cst_14 = arith.constant dense<0.000000e+00> : vector<16x128xf32>
    %19 = tpu.matmul %17, %18, %cst_14 {dimension_numbers = #tpu.dot_dimension_numbers<[1], [0], [0], [1], [0, 0, 1, 1], [], []>} : vector<16x128xbf16>, vector<128x128xbf16>, vector<16x128xf32> -> vector<16x128xf32>
    %c0_15 = arith.constant 0 : index
    %c0_16 = arith.constant 0 : index
    %20 = vector.load %arg7[%c0_15, %c0_16] : memref<1x128xf32, #tpu.memory_space<vmem>>, vector<1x128xf32>
    %21 = vector.broadcast %20 : vector<1x128xf32> to vector<16x128xf32>
    %22 = arith.addf %19, %21 : vector<16x128xf32>
    %cst_17 = arith.constant 0.000000e+00 : f32
    %23 = vector.broadcast %cst_17 : f32 to vector<16x128xf32>
    %24 = arith.maximumf %22, %23 : vector<16x128xf32>
    %25 = arith.truncf %24 : vector<16x128xf32> to vector<16x128xbf16>
    %c0_18 = arith.constant 0 : index
    %c0_19 = arith.constant 0 : index
    %26 = vector.load %arg8[%c0_18, %c0_19] : memref<128x128xbf16, #tpu.memory_space<vmem>>, vector<128x128xbf16>
    %cst_20 = arith.constant dense<0.000000e+00> : vector<16x128xf32>
    %27 = tpu.matmul %25, %26, %cst_20 {dimension_numbers = #tpu.dot_dimension_numbers<[1], [0], [0], [1], [0, 0, 1, 1], [], []>} : vector<16x128xbf16>, vector<128x128xbf16>, vector<16x128xf32> -> vector<16x128xf32>
    %c0_21 = arith.constant 0 : index
    %c0_22 = arith.constant 0 : index
    %28 = vector.load %arg9[%c0_21, %c0_22] : memref<1x128xf32, #tpu.memory_space<vmem>>, vector<1x128xf32>
    %29 = vector.broadcast %28 : vector<1x128xf32> to vector<16x128xf32>
    %30 = arith.addf %27, %29 : vector<16x128xf32>
    %31 = arith.truncf %30 : vector<16x128xf32> to vector<16x128xbf16>
    %c0_23 = arith.constant 0 : index
    %c0_24 = arith.constant 0 : index
    %32 = vector.load %arg10[%c0_23, %c0_24] : memref<16x128xbf16, #tpu.memory_space<vmem>>, vector<16x128xbf16>
    tpu.vector_store %arg10[%c0_23, %c0_24], %31 {strides = array<i32>} : memref<16x128xbf16, #tpu.memory_space<vmem>>, vector<16x128xbf16>,
    return
  }
  func.func @transform_0(%arg0: i32) -> (i32, i32) {
    %c0_i32 = arith.constant 0 : i32
    %c0_i32_0 = arith.constant 0 : i32
    return %arg0, %c0_i32 : i32, i32
  }
  func.func @transform_1(%arg0: i32) -> (i32, i32) {
    %c0_i32 = arith.constant 0 : i32
    %c0_i32_0 = arith.constant 0 : i32
    %c0_i32_1 = arith.constant 0 : i32
    return %c0_i32, %c0_i32_0 : i32, i32
  }
  func.func @transform_2(%arg0: i32) -> (i32, i32) {
    %c0_i32 = arith.constant 0 : i32
    %c0_i32_0 = arith.constant 0 : i32
    %c0_i32_1 = arith.constant 0 : i32
    return %c0_i32, %c0_i32_0 : i32, i32
  }
  func.func @transform_3(%arg0: i32) -> (i32, i32) {
    %c0_i32 = arith.constant 0 : i32
    %c0_i32_0 = arith.constant 0 : i32
    %c0_i32_1 = arith.constant 0 : i32
    return %c0_i32, %c0_i32_0 : i32, i32
  }
  func.func @transform_4(%arg0: i32) -> (i32, i32) {
    %c0_i32 = arith.constant 0 : i32
    %c0_i32_0 = arith.constant 0 : i32
    %c0_i32_1 = arith.constant 0 : i32
    return %c0_i32, %c0_i32_0 : i32, i32
  }
  func.func @transform_5(%arg0: i32) -> (i32, i32) {
    %c0_i32 = arith.constant 0 : i32
    %c0_i32_0 = arith.constant 0 : i32
    %c0_i32_1 = arith.constant 0 : i32
    return %c0_i32, %c0_i32_0 : i32, i32
  }
  func.func @transform_6(%arg0: i32) -> (i32, i32) {
    %c0_i32 = arith.constant 0 : i32
    %c0_i32_0 = arith.constant 0 : i32
    %c0_i32_1 = arith.constant 0 : i32
    return %c0_i32, %c0_i32_0 : i32, i32
  }
  func.func @transform_7(%arg0: i32) -> (i32, i32) {
    %c0_i32 = arith.constant 0 : i32
    %c0_i32_0 = arith.constant 0 : i32
    %c0_i32_1 = arith.constant 0 : i32
    return %c0_i32, %c0_i32_0 : i32, i32
  }
  func.func @transform_8(%arg0: i32) -> (i32, i32) {
    %c0_i32 = arith.constant 0 : i32
    %c0_i32_0 = arith.constant 0 : i32
    %c0_i32_1 = arith.constant 0 : i32
    return %c0_i32, %c0_i32_0 : i32, i32
  }
  func.func @transform_9(%arg0: i32) -> (i32, i32) {
    %c0_i32 = arith.constant 0 : i32
    %c0_i32_0 = arith.constant 0 : i32
    return %arg0, %c0_i32 : i32, i32
  }
}

</mosaic_0001>

<llo_original>
// kernel: music_classifier_forward.1
$region0: #{music_classifier_forward.1}
  #allocation0 [shape = 'u32[]', space=smem, size = 0x4, offset = 0x4, fixed_abs, tag = 'smem constant byte address 0x4 - core index']
  #allocation1 [shape = 'u32[144,128]{1,0:T(1,128)}', space=vmem, size = 0x12000, scoped, tag = 'internal scratch']
  %s0 = inlined_call_operand.vmem [shape: f32[16,32], index: 0, kind: input, shape index: {}]
  %s1 = inlined_call_operand.vmem [shape: bf16[32,256], index: 1, kind: input, shape index: {}]
  %s2 = inlined_call_operand.vmem [shape: f32[1,256], index: 2, kind: input, shape index: {}]
  %s3 = inlined_call_operand.vmem [shape: bf16[256,128], index: 3, kind: input, shape index: {}]
  %s4 = inlined_call_operand.vmem [shape: f32[1,128], index: 4, kind: input, shape index: {}]
  %s5 = inlined_call_operand.vmem [shape: bf16[128,128], index: 5, kind: input, shape index: {}]
  %s6 = inlined_call_operand.vmem [shape: f32[1,128], index: 6, kind: input, shape index: {}]
  %s7 = inlined_call_operand.vmem [shape: bf16[128,128], index: 7, kind: input, shape index: {}]
  %s8 = inlined_call_operand.vmem [shape: f32[1,128], index: 8, kind: input, shape index: {}]
  %s9 = inlined_call_operand.vmem [shape: bf16[16,128], index: 9, kind: output, shape index: {}]
  %s10 = sld [smem:[#allocation0]]
  $region46: #{music_classifier_forward.1} parent=0
    _
  %s12 = ssub.s32 1, %s10
  %s13 = scalar_select 0, %s12, %s10
  // Predicated region
  $region2: #{music_classifier_forward.1} parent=0 // pred_check
    _
  $region3: #{music_classifier_forward.1} parent=0 // pred_check_branch
    %15 = sbr.rel (0) target = $region5
  $region4: #{music_classifier_forward.1} parent=0 // pred_region
    _
  $region5: #{music_classifier_forward.1} parent=0 // pred_fallthru
    _
  // Predicated region
  $region6: #{music_classifier_forward.1} parent=0 // pred_check
    _
  $region7: #{music_classifier_forward.1} parent=0 // pred_check_branch
    %17 = sbr.rel (0) target = $region9
  $region8: #{music_classifier_forward.1} parent=0 // pred_region
    _
  $region9: #{music_classifier_forward.1} parent=0 // pred_fallthru
    _
  // Predicated region
  $region10: #{music_classifier_forward.1} parent=0 // pred_check
    _
  $region11: #{music_classifier_forward.1} parent=0 // pred_check_branch
    %19 = sbr.rel (0) target = $region13
  $region12: #{music_classifier_forward.1} parent=0 // pred_region
    _
  $region13: #{music_classifier_forward.1} parent=0 // pred_fallthru
    _
  // Predicated region
  $region14: #{music_classifier_forward.1} parent=0 // pred_check
    _
  $region15: #{music_classifier_forward.1} parent=0 // pred_check_branch
    %21 = sbr.rel (0) target = $region17
  $region16: #{music_classifier_forward.1} parent=0 // pred_region
    _
  $region17: #{music_classifier_forward.1} parent=0 // pred_fallthru
    _
  // Predicated region
  $region18: #{music_classifier_forward.1} parent=0 // pred_check
    _
  $region19: #{music_classifier_forward.1} parent=0 // pred_check_branch
    %23 = sbr.rel (0) target = $region21
  $region20: #{music_classifier_forward.1} parent=0 // pred_region
    _
  $region21: #{music_classifier_forward.1} parent=0 // pred_fallthru
    _
  // Predicated region
  $region22: #{music_classifier_forward.1} parent=0 // pred_check
    _
  $region23: #{music_classifier_forward.1} parent=0 // pred_check_branch
    %25 = sbr.rel (0) target = $region25
  $region24: #{music_classifier_forward.1} parent=0 // pred_region
    _
  $region25: #{music_classifier_forward.1} parent=0 // pred_fallthru
    _
  // Predicated region
  $region26: #{music_classifier_forward.1} parent=0 // pred_check
    _
  $region27: #{music_classifier_forward.1} parent=0 // pred_check_branch
    %27 = sbr.rel (0) target = $region29
  $region28: #{music_classifier_forward.1} parent=0 // pred_region
    _
  $region29: #{music_classifier_forward.1} parent=0 // pred_fallthru
    _
  // Predicated region
  $region30: #{music_classifier_forward.1} parent=0 // pred_check
    _
  $region31: #{music_classifier_forward.1} parent=0 // pred_check_branch
    %29 = sbr.rel (0) target = $region33
  $region32: #{music_classifier_forward.1} parent=0 // pred_region
    _
  $region33: #{music_classifier_forward.1} parent=0 // pred_fallthru
    _
  // Predicated region
  $region34: #{music_classifier_forward.1} parent=0 // pred_check
    _
  $region35: #{music_classifier_forward.1} parent=0 // pred_check_branch
    %31 = sbr.rel (0) target = $region37
  $region36: #{music_classifier_forward.1} parent=0 // pred_region
    _
  $region37: #{music_classifier_forward.1} parent=0 // pred_fallthru
    _
  %v33 = vld [vmem:[%s0] sm:$0xff]
  %v34 = vld [vmem:[%s0 + $0x8] sm:$0xff]
  %v35 = vpack.c.bf16 %v34, %v33
  %v36 = vld [vmem:[%s1] sm:$0xff]
  %v37 = vld [vmem:[%s1 + $0x8] sm:$0xff]
  %v38 = vld [vmem:[%s1 + $0x10] sm:$0xff]
  %v39 = vld [vmem:[%s1 + $0x18] sm:$0xff]
  %v40 = vld [vmem:[%s2] sm:$0x3]
  %v42 = vlaneseq
  %v43 = vshrl.u32 %v42, 7
  %v44 = vsub.s32 0, %v43
  %v45 = vrot.slane %v40, %v44
  %v46 = vlaneseq
  %v47 = vshrl.u32 %v46, 7
  %v48 = vsub.s32 1, %v47
  %v49 = vrot.slane %v40, %v48
  %v56 = vunpack.c.l.b16 %v36
  %v57 = vunpack.c.h.b16 %v36
  %v58 = vunpack.c.l.b16 %v37
  %v59 = vunpack.c.h.b16 %v37
  %v60 = vunpack.c.l.b16 %v38
  %v61 = vunpack.c.h.b16 %v38
  %v62 = vunpack.c.l.b16 %v39
  %v63 = vunpack.c.h.b16 %v39
  %v64 = vpack.c.b16 %v58, %v56
  %v65 = vpack.c.b16 %v59, %v57
  %v66 = vpack.c.b16 %v62, %v60
  %v67 = vpack.c.b16 %v63, %v61
  %vm72 = vcmask 261120
  %v74 = vsel %vm72, %v35, 0
  %76 = vmatprep.subr.bf16.mxu0 %v65
  %77 = vmatpush1.bf16.msra.mxu0 %v64
  %78 = vmatprep.subr.bf16.mxu0 %v67
  %79 = vmatpush1.bf16.msra.mxu0 %v66
  %80 = vmatprep.subr.bf16.mxu0 0
  %81 = vmatpush1.bf16.msra.mxu0 0
  %82 = vmatprep.subr.bf16.mxu0 0
  %83 = vmatpush1.bf16.msra.mxu0 0
  %84 = vmatprep.subr.bf16.mxu0 0
  %85 = vmatpush1.bf16.msra.mxu0 0
  %86 = vmatprep.subr.bf16.mxu0 0
  %87 = vmatpush1.bf16.msra.mxu0 0
  %88 = vmatprep.subr.bf16.mxu0 0
  %89 = vmatpush1.bf16.msra.mxu0 0
  %90 = vmatprep.subr.bf16.mxu0 0
  %91 = vmatpush1.bf16.msra.mxu0 0
  %92 = vmatprep.subr.bf16.mxu0 0
  %93 = vmatpush1.bf16.msra.mxu0 0
  %94 = vmatprep.subr.bf16.mxu0 0
  %95 = vmatpush1.bf16.msra.mxu0 0
  %96 = vmatprep.subr.bf16.mxu0 0
  %97 = vmatpush1.bf16.msra.mxu0 0
  %98 = vmatprep.subr.bf16.mxu0 0
  %99 = vmatpush1.bf16.msra.mxu0 0
  %100 = vmatprep.subr.bf16.mxu0 0
  %101 = vmatpush1.bf16.msra.mxu0 0
  %102 = vmatprep.subr.bf16.mxu0 0
  %103 = vmatpush1.bf16.msra.mxu0 0
  %104 = vmatprep.subr.bf16.mxu0 0
  %105 = vmatpush1.bf16.msra.mxu0 0
  %106 = vmatprep.subr.bf16.mxu0 0
  %107 = vmatpush1.bf16.msra.mxu0 0
  %108 = vmatprep.mubr.bf16.mxu0 0
  %109 = vmatmul.mubr.bf16.gmra.mrb[0].mxu0 %v74
  %v110 = vpop.f32.mrb[0].mxu0
  %v111 = vadd.f32 %v45, %v110
  %v112 = vpop.f32.mrb[0].mxu0
  %v113 = vadd.f32 %v49, %v112
  %v114 = vpop.f32.mrb[0].mxu0
  %v115 = vadd.f32 %v45, %v114
  %v116 = vpop.f32.mrb[0].mxu0
  %v117 = vadd.f32 %v49, %v116
  %118 = vdwg.mxu0
  %v119 = vmax.f32 %v111, 0.0
  %v120 = vmax.f32 %v113, 0.0
  %v121 = vmax.f32 %v115, 0.0
  %v122 = vmax.f32 %v117, 0.0
  %v123 = vpack.c.bf16 %v121, %v119
  %v124 = vpack.c.bf16 %v122, %v120
  %v125 = vld [vmem:[%s3] sm:$0xf]
  %v126 = vld [vmem:[%s3 + $0x4] sm:$0xf]
  %v127 = vld [vmem:[%s3 + $0x8] sm:$0xf]
  %v128 = vld [vmem:[%s3 + $0xc] sm:$0xf]
  %v129 = vld [vmem:[%s3 + $0x10] sm:$0xf]
  %v130 = vld [vmem:[%s3 + $0x14] sm:$0xf]
  %v131 = vld [vmem:[%s3 + $0x18] sm:$0xf]
  %v132 = vld [vmem:[%s3 + $0x1c] sm:$0xf]
  %v133 = vld [vmem:[%s3 + $0x20] sm:$0xf]
  %v134 = vld [vmem:[%s3 + $0x24] sm:$0xf]
  %v135 = vld [vmem:[%s3 + $0x28] sm:$0xf]
  %v136 = vld [vmem:[%s3 + $0x2c] sm:$0xf]
  %v137 = vld [vmem:[%s3 + $0x30] sm:$0xf]
  %v138 = vld [vmem:[%s3 + $0x34] sm:$0xf]
  %v139 = vld [vmem:[%s3 + $0x38] sm:$0xf]
  %v140 = vld [vmem:[%s3 + $0x3c] sm:$0xf]
  %v141 = vld [vmem:[%s3 + $0x40] sm:$0xf]
  %v142 = vld [vmem:[%s3 + $0x44] sm:$0xf]
  %v143 = vld [vmem:[%s3 + $0x48] sm:$0xf]
  %v144 = vld [vmem:[%s3 + $0x4c] sm:$0xf]
  %v145 = vld [vmem:[%s3 + $0x50] sm:$0xf]
  %v146 = vld [vmem:[%s3 + $0x54] sm:$0xf]
  %v147 = vld [vmem:[%s3 + $0x58] sm:$0xf]
  %v148 = vld [vmem:[%s3 + $0x5c] sm:$0xf]
  %v149 = vld [vmem:[%s3 + $0x60] sm:$0xf]
  %v150 = vld [vmem:[%s3 + $0x64] sm:$0xf]
  %v151 = vld [vmem:[%s3 + $0x68] sm:$0xf]
  %v152 = vld [vmem:[%s3 + $0x6c] sm:$0xf]
  %v153 = vld [vmem:[%s3 + $0x70] sm:$0xf]
  %v154 = vld [vmem:[%s3 + $0x74] sm:$0xf]
  %v155 = vld [vmem:[%s3 + $0x78] sm:$0xf]
  %v156 = vld [vmem:[%s3 + $0x7c] sm:$0xf]
  %v157 = vld [vmem:[%s4] sm:$0x1]
  %v159 = vlaneseq
  %v160 = vshrl.u32 %v159, 7
  %v161 = vsub.s32 0, %v160
  %v162 = vrot.slane %v157, %v161
  %v196 = vunpack.c.l.b16 %v125
  %v197 = vunpack.c.l.b16 %v126
  %v198 = vunpack.c.l.b16 %v127
  %v199 = vunpack.c.l.b16 %v128
  %v200 = vunpack.c.l.b16 %v129
  %v201 = vunpack.c.l.b16 %v130
  %v202 = vunpack.c.l.b16 %v131
  %v203 = vunpack.c.l.b16 %v132
  %v204 = vunpack.c.l.b16 %v133
  %v205 = vunpack.c.l.b16 %v134
  %v206 = vunpack.c.l.b16 %v135
  %v207 = vunpack.c.l.b16 %v136
  %v208 = vunpack.c.l.b16 %v137
  %v209 = vunpack.c.l.b16 %v138
  %v210 = vunpack.c.l.b16 %v139
  %v211 = vunpack.c.l.b16 %v140
  %v212 = vunpack.c.l.b16 %v141
  %v213 = vunpack.c.l.b16 %v142
  %v214 = vunpack.c.l.b16 %v143
  %v215 = vunpack.c.l.b16 %v144
  %v216 = vunpack.c.l.b16 %v145
  %v217 = vunpack.c.l.b16 %v146
  %v218 = vunpack.c.l.b16 %v147
  %v219 = vunpack.c.l.b16 %v148
  %v220 = vunpack.c.l.b16 %v149
  %v221 = vunpack.c.l.b16 %v150
  %v222 = vunpack.c.l.b16 %v151
  %v223 = vunpack.c.l.b16 %v152
  %v224 = vunpack.c.l.b16 %v153
  %v225 = vunpack.c.l.b16 %v154
  %v226 = vunpack.c.l.b16 %v155
  %v227 = vunpack.c.l.b16 %v156
  %v228 = vpack.c.b16 %v197, %v196
  %v229 = vpack.c.b16 %v199, %v198
  %v230 = vpack.c.b16 %v201, %v200
  %v231 = vpack.c.b16 %v203, %v202
  %v232 = vpack.c.b16 %v205, %v204
  %v233 = vpack.c.b16 %v207, %v206
  %v234 = vpack.c.b16 %v209, %v208
  %v235 = vpack.c.b16 %v211, %v210
  %v236 = vpack.c.b16 %v213, %v212
  %v237 = vpack.c.b16 %v215, %v214
  %v238 = vpack.c.b16 %v217, %v216
  %v239 = vpack.c.b16 %v219, %v218
  %v240 = vpack.c.b16 %v221, %v220
  %v241 = vpack.c.b16 %v223, %v222
  %v242 = vpack.c.b16 %v225, %v224
  %v243 = vpack.c.b16 %v227, %v226
  %260 = vmatprep.subr.bf16.mxu0 0
  %261 = vmatpush1.bf16.msra.mxu0 %v228
  %262 = vmatprep.subr.bf16.mxu0 0
  %263 = vmatpush1.bf16.msra.mxu0 %v229
  %264 = vmatprep.subr.bf16.mxu0 0
  %265 = vmatpush1.bf16.msra.mxu0 %v230
  %266 = vmatprep.subr.bf16.mxu0 0
  %267 = vmatpush1.bf16.msra.mxu0 %v231
  %268 = vmatprep.subr.bf16.mxu0 0
  %269 = vmatpush1.bf16.msra.mxu0 %v232
  %270 = vmatprep.subr.bf16.mxu0 0
  %271 = vmatpush1.bf16.msra.mxu0 %v233
  %272 = vmatprep.subr.bf16.mxu0 0
  %273 = vmatpush1.bf16.msra.mxu0 %v234
  %274 = vmatprep.subr.bf16.mxu0 0
  %275 = vmatpush1.bf16.msra.mxu0 %v235
  %276 = vmatprep.subr.bf16.mxu0 0
  %277 = vmatpush1.bf16.msra.mxu0 %v236
  %278 = vmatprep.subr.bf16.mxu0 0
  %279 = vmatpush1.bf16.msra.mxu0 %v237
  %280 = vmatprep.subr.bf16.mxu0 0
  %281 = vmatpush1.bf16.msra.mxu0 %v238
  %282 = vmatprep.subr.bf16.mxu0 0
  %283 = vmatpush1.bf16.msra.mxu0 %v239
  %284 = vmatprep.subr.bf16.mxu0 0
  %285 = vmatpush1.bf16.msra.mxu0 %v240
  %286 = vmatprep.subr.bf16.mxu0 0
  %287 = vmatpush1.bf16.msra.mxu0 %v241
  %288 = vmatprep.subr.bf16.mxu0 0
  %289 = vmatpush1.bf16.msra.mxu0 %v242
  %290 = vmatprep.subr.bf16.mxu0 0
  %291 = vmatpush1.bf16.msra.mxu0 %v243
  %292 = vmatprep.mubr.bf16.mxu0 %v124
  %293 = vmatmul.mubr.bf16.gmra.mrb[0].mxu0 %v123
  %v294 = vpop.f32.mrb[0].mxu0
  %v295 = vadd.f32 %v162, %v294
  %v296 = vpop.f32.mrb[0].mxu0
  %v297 = vpop.f32.mrb[0].mxu0
  %v298 = vadd.f32 %v162, %v297
  %v299 = vpop.f32.mrb[0].mxu0
  %300 = vdwg.mxu0
  %v301 = vmax.f32 %v295, 0.0
  %v302 = vmax.f32 %v298, 0.0
  %v303 = vpack.c.bf16 %v302, %v301
  %v304 = vld [vmem:[%s5] sm:$0xf]
  %v305 = vld [vmem:[%s5 + $0x4] sm:$0xf]
  %v306 = vld [vmem:[%s5 + $0x8] sm:$0xf]
  %v307 = vld [vmem:[%s5 + $0xc] sm:$0xf]
  %v308 = vld [vmem:[%s5 + $0x10] sm:$0xf]
  %v309 = vld [vmem:[%s5 + $0x14] sm:$0xf]
  %v310 = vld [vmem:[%s5 + $0x18] sm:$0xf]
  %v311 = vld [vmem:[%s5 + $0x1c] sm:$0xf]
  %v312 = vld [vmem:[%s5 + $0x20] sm:$0xf]
  %v313 = vld [vmem:[%s5 + $0x24] sm:$0xf]
  %v314 = vld [vmem:[%s5 + $0x28] sm:$0xf]
  %v315 = vld [vmem:[%s5 + $0x2c] sm:$0xf]
  %v316 = vld [vmem:[%s5 + $0x30] sm:$0xf]
  %v317 = vld [vmem:[%s5 + $0x34] sm:$0xf]
  %v318 = vld [vmem:[%s5 + $0x38] sm:$0xf]
  %v319 = vld [vmem:[%s5 + $0x3c] sm:$0xf]
  %v320 = vld [vmem:[%s6] sm:$0x1]
  %v322 = vlaneseq
  %v323 = vshrl.u32 %v322, 7
  %v324 = vsub.s32 0, %v323
  %v325 = vrot.slane %v320, %v324
  %v343 = vunpack.c.l.b16 %v304
  %v344 = vunpack.c.l.b16 %v305
  %v345 = vunpack.c.l.b16 %v306
  %v346 = vunpack.c.l.b16 %v307
  %v347 = vunpack.c.l.b16 %v308
  %v348 = vunpack.c.l.b16 %v309
  %v349 = vunpack.c.l.b16 %v310
  %v350 = vunpack.c.l.b16 %v311
  %v351 = vunpack.c.l.b16 %v312
  %v352 = vunpack.c.l.b16 %v313
  %v353 = vunpack.c.l.b16 %v314
  %v354 = vunpack.c.l.b16 %v315
  %v355 = vunpack.c.l.b16 %v316
  %v356 = vunpack.c.l.b16 %v317
  %v357 = vunpack.c.l.b16 %v318
  %v358 = vunpack.c.l.b16 %v319
  %v359 = vpack.c.b16 %v344, %v343
  %v360 = vpack.c.b16 %v346, %v345
  %v361 = vpack.c.b16 %v348, %v347
  %v362 = vpack.c.b16 %v350, %v349
  %v363 = vpack.c.b16 %v352, %v351
  %v364 = vpack.c.b16 %v354, %v353
  %v365 = vpack.c.b16 %v356, %v355
  %v366 = vpack.c.b16 %v358, %v357
  %375 = vmatprep.subr.bf16.mxu0 0
  %376 = vmatpush1.bf16.msra.mxu0 %v359
  %377 = vmatprep.subr.bf16.mxu0 0
  %378 = vmatpush1.bf16.msra.mxu0 %v360
  %379 = vmatprep.subr.bf16.mxu0 0
  %380 = vmatpush1.bf16.msra.mxu0 %v361
  %381 = vmatprep.subr.bf16.mxu0 0
  %382 = vmatpush1.bf16.msra.mxu0 %v362
  %383 = vmatprep.subr.bf16.mxu0 0
  %384 = vmatpush1.bf16.msra.mxu0 %v363
  %385 = vmatprep.subr.bf16.mxu0 0
  %386 = vmatpush1.bf16.msra.mxu0 %v364
  %387 = vmatprep.subr.bf16.mxu0 0
  %388 = vmatpush1.bf16.msra.mxu0 %v365
  %389 = vmatprep.subr.bf16.mxu0 0
  %390 = vmatpush1.bf16.msra.mxu0 %v366
  %391 = vmatprep.subr.bf16.mxu0 0
  %392 = vmatpush1.bf16.msra.mxu0 0
  %393 = vmatprep.subr.bf16.mxu0 0
  %394 = vmatpush1.bf16.msra.mxu0 0
  %395 = vmatprep.subr.bf16.mxu0 0
  %396 = vmatpush1.bf16.msra.mxu0 0
  %397 = vmatprep.subr.bf16.mxu0 0
  %398 = vmatpush1.bf16.msra.mxu0 0
  %399 = vmatprep.subr.bf16.mxu0 0
  %400 = vmatpush1.bf16.msra.mxu0 0
  %401 = vmatprep.subr.bf16.mxu0 0
  %402 = vmatpush1.bf16.msra.mxu0 0
  %403 = vmatprep.subr.bf16.mxu0 0
  %404 = vmatpush1.bf16.msra.mxu0 0
  %405 = vmatprep.subr.bf16.mxu0 0
  %406 = vmatpush1.bf16.msra.mxu0 0
  %407 = vmatprep.mubr.bf16.mxu0 0
  %408 = vmatmul.mubr.bf16.gmra.mrb[0].mxu0 %v303
  %v409 = vpop.f32.mrb[0].mxu0
  %v410 = vadd.f32 %v325, %v409
  %v411 = vpop.f32.mrb[0].mxu0
  %v412 = vpop.f32.mrb[0].mxu0
  %v413 = vadd.f32 %v325, %v412
  %v414 = vpop.f32.mrb[0].mxu0
  %415 = vdwg.mxu0
  %v416 = vmax.f32 %v410, 0.0
  %v417 = vmax.f32 %v413, 0.0
  %v418 = vpack.c.bf16 %v417, %v416
  %v419 = vld [vmem:[%s7] sm:$0xf]
  %v420 = vld [vmem:[%s7 + $0x4] sm:$0xf]
  %v421 = vld [vmem:[%s7 + $0x8] sm:$0xf]
  %v422 = vld [vmem:[%s7 + $0xc] sm:$0xf]
  %v423 = vld [vmem:[%s7 + $0x10] sm:$0xf]
  %v424 = vld [vmem:[%s7 + $0x14] sm:$0xf]
  %v425 = vld [vmem:[%s7 + $0x18] sm:$0xf]
  %v426 = vld [vmem:[%s7 + $0x1c] sm:$0xf]
  %v427 = vld [vmem:[%s7 + $0x20] sm:$0xf]
  %v428 = vld [vmem:[%s7 + $0x24] sm:$0xf]
  %v429 = vld [vmem:[%s7 + $0x28] sm:$0xf]
  %v430 = vld [vmem:[%s7 + $0x2c] sm:$0xf]
  %v431 = vld [vmem:[%s7 + $0x30] sm:$0xf]
  %v432 = vld [vmem:[%s7 + $0x34] sm:$0xf]
  %v433 = vld [vmem:[%s7 + $0x38] sm:$0xf]
  %v434 = vld [vmem:[%s7 + $0x3c] sm:$0xf]
  %v435 = vld [vmem:[%s8] sm:$0x1]
  %v437 = vlaneseq
  %v438 = vshrl.u32 %v437, 7
  %v439 = vsub.s32 0, %v438
  %v440 = vrot.slane %v435, %v439
  %v458 = vunpack.c.l.b16 %v419
  %v459 = vunpack.c.l.b16 %v420
  %v460 = vunpack.c.l.b16 %v421
  %v461 = vunpack.c.l.b16 %v422
  %v462 = vunpack.c.l.b16 %v423
  %v463 = vunpack.c.l.b16 %v424
  %v464 = vunpack.c.l.b16 %v425
  %v465 = vunpack.c.l.b16 %v426
  %v466 = vunpack.c.l.b16 %v427
  %v467 = vunpack.c.l.b16 %v428
  %v468 = vunpack.c.l.b16 %v429
  %v469 = vunpack.c.l.b16 %v430
  %v470 = vunpack.c.l.b16 %v431
  %v471 = vunpack.c.l.b16 %v432
  %v472 = vunpack.c.l.b16 %v433
  %v473 = vunpack.c.l.b16 %v434
  %v474 = vpack.c.b16 %v459, %v458
  %v475 = vpack.c.b16 %v461, %v460
  %v476 = vpack.c.b16 %v463, %v462
  %v477 = vpack.c.b16 %v465, %v464
  %v478 = vpack.c.b16 %v467, %v466
  %v479 = vpack.c.b16 %v469, %v468
  %v480 = vpack.c.b16 %v471, %v470
  %v481 = vpack.c.b16 %v473, %v472
  %490 = vmatprep.subr.bf16.mxu0 0
  %491 = vmatpush1.bf16.msra.mxu0 %v474
  %492 = vmatprep.subr.bf16.mxu0 0
  %493 = vmatpush1.bf16.msra.mxu0 %v475
  %494 = vmatprep.subr.bf16.mxu0 0
  %495 = vmatpush1.bf16.msra.mxu0 %v476
  %496 = vmatprep.subr.bf16.mxu0 0
  %497 = vmatpush1.bf16.msra.mxu0 %v477
  %498 = vmatprep.subr.bf16.mxu0 0
  %499 = vmatpush1.bf16.msra.mxu0 %v478
  %500 = vmatprep.subr.bf16.mxu0 0
  %501 = vmatpush1.bf16.msra.mxu0 %v479
  %502 = vmatprep.subr.bf16.mxu0 0
  %503 = vmatpush1.bf16.msra.mxu0 %v480
  %504 = vmatprep.subr.bf16.mxu0 0
  %505 = vmatpush1.bf16.msra.mxu0 %v481
  %506 = vmatprep.subr.bf16.mxu0 0
  %507 = vmatpush1.bf16.msra.mxu0 0
  %508 = vmatprep.subr.bf16.mxu0 0
  %509 = vmatpush1.bf16.msra.mxu0 0
  %510 = vmatprep.subr.bf16.mxu0 0
  %511 = vmatpush1.bf16.msra.mxu0 0
  %512 = vmatprep.subr.bf16.mxu0 0
  %513 = vmatpush1.bf16.msra.mxu0 0
  %514 = vmatprep.subr.bf16.mxu0 0
  %515 = vmatpush1.bf16.msra.mxu0 0
  %516 = vmatprep.subr.bf16.mxu0 0
  %517 = vmatpush1.bf16.msra.mxu0 0
  %518 = vmatprep.subr.bf16.mxu0 0
  %519 = vmatpush1.bf16.msra.mxu0 0
  %520 = vmatprep.subr.bf16.mxu0 0
  %521 = vmatpush1.bf16.msra.mxu0 0
  %522 = vmatprep.mubr.bf16.mxu0 0
  %523 = vmatmul.mubr.bf16.gmra.mrb[0].mxu0 %v418
  %v524 = vpop.f32.mrb[0].mxu0
  %v525 = vadd.f32 %v440, %v524
  %v526 = vpop.f32.mrb[0].mxu0
  %v527 = vpop.f32.mrb[0].mxu0
  %v528 = vadd.f32 %v440, %v527
  %v529 = vpop.f32.mrb[0].mxu0
  %530 = vdwg.mxu0
  %v531 = vpack.c.bf16 %v528, %v525
  %v533 = vunpack.c.l.b16 %v531
  %v534 = vunpack.c.h.b16 %v531
  %v535 = vpack.c.b16 %v533, %v533
  %v536 = vpack.c.b16 %v534, %v534
  %539 = vst [vmem:[%s9] sm:$0xf] %v535
  %540 = vst [vmem:[%s9 + $0x4] sm:$0xf] %v536
  // Predicated region
  $region38: #{music_classifier_forward.1} parent=0 // pred_check
    _
  $region39: #{music_classifier_forward.1} parent=0 // pred_check_branch
    %542 = sbr.rel (0) target = $region41
  $region40: #{music_classifier_forward.1} parent=0 // pred_region
    _
  $region41: #{music_classifier_forward.1} parent=0 // pred_fallthru
    _
  // Predicated region
  $region42: #{music_classifier_forward.1} parent=0 // pred_check
    _
  $region43: #{music_classifier_forward.1} parent=0 // pred_check_branch
    %544 = sbr.rel (0) target = $region45
  $region44: #{music_classifier_forward.1} parent=0 // pred_region
    _
  $region45: #{music_classifier_forward.1} parent=0 // pred_fallthru
    _

</llo_original>
